<compile_context>
chip_gen: v7x
topology: tpu7x:2x2x1
jax: 0.10.0
libtpu: 0.0.40
codegen_flags: <defaults>
</compile_context>

<pallas_src>
import math
import jax
import jax.numpy as jnp
from jax.experimental import pallas as pl
from jax.experimental.pallas import tpu as pltpu


def _positive_linear_kernel(x_ref, w_ref, bias_ref, o_ref, w_scratch):
    # x_ref:     (PB, TN, D_in)
    # w_ref:     (PB, D_out, D_in)   -- raw parameters (module layout, no transpose)
    # bias_ref:  (PB, 1,  D_out)
    # o_ref:     (PB, TN, D_out)
    # w_scratch: (PB, D_out, D_in)   -- softplus(raw), cached across N tiles

    # Hoisted softplus: only on the first N tile of each petal block.
    # CORRECTNESS: this relies on the N grid axis being innermost and
    # "arbitrary" (sequential), so the scratch is written before later N tiles
    # of the same petal block consume it. Do not mark it "parallel"/reorder.
    @pl.when(pl.program_id(1) == 0)
    def _():
        w32 = jnp.logaddexp(w_ref[...].astype(jnp.float32), 0.0)  # stable softplus
        w_scratch[...] = w32.astype(w_scratch.dtype)

    # Batched matmul on the MXU, contracting the shared last dim:
    # (PB, TN, D_in) x (PB, D_out, D_in) -> (PB, TN, D_out)
    out = jnp.einsum(
        "bnd,bod->bno",
        x_ref[...].astype(w_scratch.dtype),
        w_scratch[...],
        preferred_element_type=jnp.float32,
    )
    # Fold the bias add into the store.
    out = out + bias_ref[...].astype(jnp.float32)
    o_ref[...] = out.astype(o_ref.dtype)


def _vmem_bytes(pb, tn, d_in, d_out, in_itemsize, raw_itemsize, out_itemsize,
                scratch_itemsize):
    x_b = pb * tn * d_in * in_itemsize
    w_b = pb * d_out * d_in * raw_itemsize
    b_b = pb * 1 * d_out * raw_itemsize
    o_b = pb * tn * d_out * out_itemsize
    scratch = pb * d_out * d_in * scratch_itemsize
    # Inputs/outputs are double-buffered by the pipeline; scratch is single.
    return 2 * (x_b + w_b + b_b + o_b) + scratch


def _sublane_pack(dtype):
    # sublanes per vreg row group: f32 -> 8, bf16 -> 16, int8/fp8 -> 32
    return max(8, 32 // jnp.dtype(dtype).itemsize)


def _vmem_budget_and_limit():
    """Generation-aware VMEM budget (for tile choice) and compiler limit."""
    cap = None
    try:
        cap = int(pltpu.get_tpu_info().vmem_capacity_bytes)
    except Exception:
        cap = None
    if not cap or cap <= 0:
        cap = 64 * 1024 * 1024  # conservative (v7x per-core VMEM)
    limit = int(cap * 0.75)                       # leave ~25% headroom
    budget = max(limit - 8 * 1024 * 1024, limit // 2)  # slack for compiler scratch
    return budget, limit


def _choose_tiles(P, N, d_in, d_out, in_itemsize, raw_itemsize, out_itemsize,
                  scratch_itemsize, sublane_pack, budget_bytes):
    # N tile must either be the full extent or a multiple of the sublane pack.
    n_candidates = sorted(
        {N} | {d for d in range(sublane_pack, N, sublane_pack) if N % d == 0},
        reverse=True)
    # Keep the "parallel" petal grid axis at extent >= 2 whenever possible so
    # both TensorCores get work on v7x (harmless extra step on 1-TC chips).
    if P >= 2:
        p_candidates = [d for d in range(P // 2, 0, -1) if P % d == 0]
    else:
        p_candidates = [1]
    for tn in n_candidates:
        for pb in p_candidates:
            if _vmem_bytes(pb, tn, d_in, d_out, in_itemsize, raw_itemsize,
                           out_itemsize, scratch_itemsize) <= budget_bytes:
                return pb, tn
    # TODO(synk): add a K (=D_in) grid axis with an f32 accumulator so very
    # large D_in*D_out configurations fit VMEM instead of erroring.
    raise ValueError(
        "PositiveLinear3DHK Pallas kernel: no (PB, TN) tile fits the VMEM "
        f"budget ({budget_bytes} bytes) for P={P}, N={N}, D_in={d_in}, "
        f"D_out={d_out}.")


def positive_linear_3dhk(x, raw, bias, *, use_bf16_matmul=False):
    """x: (P, N, D_in), raw: (P, D_out, D_in), bias: (P, D_out) -> (P, N, D_out).

    Eval-mode forward of PositiveLinear3DHK (softplus weights, no Frobenius
    normalization). Set use_bf16_matmul=True to run the MXU contraction in
    bf16 (accuracy/throughput tradeoff on v6e/v7x); accumulation stays f32.
    """
    P, N, D_in = x.shape
    Pw, D_out, D_in_w = raw.shape
    assert Pw == P and D_in_w == D_in, "raw must be (P, D_out, D_in)"
    assert bias.shape == (P, D_out), "bias must be (P, D_out)"

    bias3 = bias[:, None, :]  # (P, 1, D_out): trailing dims are full extents

    compute_dtype = jnp.bfloat16 if use_bf16_matmul else x.dtype
    in_itemsize = jnp.dtype(x.dtype).itemsize
    raw_itemsize = jnp.dtype(raw.dtype).itemsize
    out_itemsize = jnp.dtype(x.dtype).itemsize
    scratch_itemsize = jnp.dtype(compute_dtype).itemsize

    budget_bytes, vmem_limit = _vmem_budget_and_limit()
    PB, TN = _choose_tiles(
        P, N, D_in, D_out, in_itemsize, raw_itemsize, out_itemsize,
        scratch_itemsize, _sublane_pack(x.dtype), budget_bytes)

    grid = (P // PB, N // TN)

    cost = pl.CostEstimate(
        flops=2 * P * N * D_in * D_out,
        transcendentals=P * D_out * D_in,  # softplus exp per weight element
        bytes_accessed=(P * N * D_in * in_itemsize
                        + P * D_out * D_in * raw_itemsize
                        + P * D_out * raw_itemsize
                        + P * N * D_out * out_itemsize),
    )

    return pl.pallas_call(
        _positive_linear_kernel,
        out_shape=jax.ShapeDtypeStruct((P, N, D_out), x.dtype),
        grid_spec=pltpu.PrefetchScalarGridSpec(
            num_scalar_prefetch=0,
            grid=grid,
            in_specs=[
                pl.BlockSpec((PB, TN, D_in), lambda pi, ni: (pi, ni, 0)),
                # Weight/bias blocks are invariant along the inner N axis, so
                # the pipeline dedupes their DMAs across N tiles.
                pl.BlockSpec((PB, D_out, D_in), lambda pi, ni: (pi, 0, 0)),
                pl.BlockSpec((PB, 1, D_out), lambda pi, ni: (pi, 0, 0)),
            ],
            out_specs=pl.BlockSpec((PB, TN, D_out), lambda pi, ni: (pi, ni, 0)),
            scratch_shapes=[pltpu.VMEM((PB, D_out, D_in), compute_dtype)],
        ),
        compiler_params=pltpu.CompilerParams(
            # Petal-block axis is "parallel" (megacore split on v7x); the N
            # axis MUST stay innermost and "arbitrary" so the per-petal
            # softplus cache (pl.when on ni==0) is written before it is read.
            dimension_semantics=("parallel", "arbitrary"),
            vmem_limit_bytes=vmem_limit,
        ),
        cost_estimate=cost,
    )(x, raw, bias3)


def _reference(x, raw, bias):
    w = jax.nn.softplus(raw.astype(jnp.float32))
    out = jnp.einsum("pnd,pod->pno", x.astype(jnp.float32), w)
    return out + bias.astype(jnp.float32)[:, None, :]


if __name__ == "__main__":
    # Small shapes: petals=4, seq N=8, D_in=32, D_out=16
    P, N, D_in, D_out = 4, 8, 32, 16

    key = jax.random.PRNGKey(0)
    k_x, k_raw = jax.random.split(key)

    x = jax.random.normal(k_x, (P, N, D_in), dtype=jnp.float32)

    # Parameter init matching the module's __init__:
    #   raw ~ Normal(mean=log(sqrt(2/D_in)), std=0.2), bias = zeros
    mean = math.log(math.sqrt(2.0 / D_in))
    raw = mean + 0.2 * jax.random.normal(k_raw, (P, D_out, D_in), dtype=jnp.float32)
    bias = jnp.zeros((P, D_out), dtype=jnp.float32)

    out = positive_linear_3dhk(x, raw, bias)
    out = jax.block_until_ready(out)

    ref = _reference(x, raw, bias)
    assert out.shape == (P, N, D_out)
    assert jnp.allclose(out, ref, atol=1e-4, rtol=1e-4), "mismatch vs reference"

    # TODO(synk): training-time Frobenius normalization (norm_target) is not
    # implemented; this reproduces eval-mode semantics (norm_target=None / .eval()).
    print("KERNEL_OK")
</pallas_src>

<mosaic_0001>
module attributes {stable_mosaic.version = 11 : i64} {
  func.func @_positive_linear_kernel(%arg0: i32, %arg1: i32, %arg2: memref<2x8x32xf32, #tpu.memory_space<vmem>>, %arg3: memref<2x16x32xf32, #tpu.memory_space<vmem>>, %arg4: memref<2x1x16xf32, #tpu.memory_space<vmem>>, %arg5: memref<2x8x16xf32, #tpu.memory_space<vmem>>, %arg6: memref<2x16x32xf32, #tpu.memory_space<vmem>>) attributes {dimension_semantics = [#tpu.dimension_semantics<parallel>, #tpu.dimension_semantics<arbitrary>], iteration_bounds = array<i64: 2, 1>, scalar_prefetch = 0 : i64, scratch_operands = 1 : i64, tpu.core_type = #tpu.core_type<tc>, window_params = [{transform_indices = @transform_0, window_bounds = array<i64: 2, 8, 32>}, {transform_indices = @transform_1, window_bounds = array<i64: 2, 16, 32>}, {transform_indices = @transform_2, window_bounds = array<i64: 2, 1, 16>}, {transform_indices = @transform_3, window_bounds = array<i64: 2, 8, 16>}]} {
    %c0_i32 = arith.constant 0 : i32
    %0 = arith.cmpi eq, %arg1, %c0_i32 : i32
    %1 = arith.extui %0 : i1 to i32
    %c0_i32_0 = arith.constant 0 : i32
    %2 = arith.cmpi ne, %1, %c0_i32_0 : i32
    scf.if %2 {
      %c0_12 = arith.constant 0 : index
      %c0_13 = arith.constant 0 : index
      %c0_14 = arith.constant 0 : index
      %10 = vector.load %arg3[%c0_12, %c0_13, %c0_14] : memref<2x16x32xf32, #tpu.memory_space<vmem>>, vector<2x16x32xf32>
      %cst_15 = arith.constant 0.000000e+00 : f32
      %11 = vector.broadcast %cst_15 : f32 to vector<2x16x32xf32>
      %12 = arith.maximumf %10, %11 : vector<2x16x32xf32>
      %13 = vector.broadcast %cst_15 : f32 to vector<2x16x32xf32>
      %14 = arith.subf %10, %13 : vector<2x16x32xf32>
      %15 = arith.cmpf one, %14, %14 : vector<2x16x32xf32>
      %16 = vector.broadcast %cst_15 : f32 to vector<2x16x32xf32>
      %17 = arith.addf %10, %16 : vector<2x16x32xf32>
      %18 = math.absf %14 : vector<2x16x32xf32>
      %cst_16 = arith.constant 0.000000e+00 : f32
      %19 = vector.broadcast %cst_16 : f32 to vector<2x16x32xf32>
      %20 = arith.subf %19, %18 : vector<2x16x32xf32>
      %21 = math.exp %20 : vector<2x16x32xf32>
      %22 = math.log1p %21 : vector<2x16x32xf32>
      %23 = arith.addf %12, %22 : vector<2x16x32xf32>
      %24 = arith.select %15, %17, %23 : vector<2x16x32xi1>, vector<2x16x32xf32>
      %c0_17 = arith.constant 0 : index
      %c0_18 = arith.constant 0 : index
      %c0_19 = arith.constant 0 : index
      %25 = vector.load %arg6[%c0_17, %c0_18, %c0_19] : memref<2x16x32xf32, #tpu.memory_space<vmem>>, vector<2x16x32xf32>
      tpu.vector_store %arg6[%c0_17, %c0_18, %c0_19], %24 {strides = array<i32>} : memref<2x16x32xf32, #tpu.memory_space<vmem>>, vector<2x16x32xf32>,
    } else {
    }
    %c0 = arith.constant 0 : index
    %c0_1 = arith.constant 0 : index
    %c0_2 = arith.constant 0 : index
    %3 = vector.load %arg2[%c0, %c0_1, %c0_2] : memref<2x8x32xf32, #tpu.memory_space<vmem>>, vector<2x8x32xf32>
    %c0_3 = arith.constant 0 : index
    %c0_4 = arith.constant 0 : index
    %c0_5 = arith.constant 0 : index
    %4 = vector.load %arg6[%c0_3, %c0_4, %c0_5] : memref<2x16x32xf32, #tpu.memory_space<vmem>>, vector<2x16x32xf32>
    "tpu.trace_start"() <{level = 10 : i32, message = "bnd,bod->bno"}> : () -> ()
    %cst = arith.constant dense<0.000000e+00> : vector<2x8x16xf32>
    %5 = tpu.matmul %3, %4, %cst {dimension_numbers = #tpu.dot_dimension_numbers<[2], [2], [1], [1], [0, 0, 0, 1, 1, 1], [0], [0]>} : vector<2x8x32xf32>, vector<2x16x32xf32>, vector<2x8x16xf32> -> vector<2x8x16xf32>
    "tpu.trace_stop"() : () -> ()
    %c0_6 = arith.constant 0 : index
    %c0_7 = arith.constant 0 : index
    %c0_8 = arith.constant 0 : index
    %6 = vector.load %arg4[%c0_6, %c0_7, %c0_8] : memref<2x1x16xf32, #tpu.memory_space<vmem>>, vector<2x1x16xf32>
    %7 = vector.broadcast %6 : vector<2x1x16xf32> to vector<2x8x16xf32>
    %8 = arith.addf %5, %7 : vector<2x8x16xf32>
    %c0_9 = arith.constant 0 : index
    %c0_10 = arith.constant 0 : index
    %c0_11 = arith.constant 0 : index
    %9 = vector.load %arg5[%c0_9, %c0_10, %c0_11] : memref<2x8x16xf32, #tpu.memory_space<vmem>>, vector<2x8x16xf32>
    tpu.vector_store %arg5[%c0_9, %c0_10, %c0_11], %8 {strides = array<i32>} : memref<2x8x16xf32, #tpu.memory_space<vmem>>, vector<2x8x16xf32>,
    return
  }
  func.func @transform_0(%arg0: i32, %arg1: i32) -> (i32, i32, i32) {
    %c0_i32 = arith.constant 0 : i32
    %c0_i32_0 = arith.constant 0 : i32
    return %arg0, %arg1, %c0_i32 : i32, i32, i32
  }
  func.func @transform_1(%arg0: i32, %arg1: i32) -> (i32, i32, i32) {
    %c0_i32 = arith.constant 0 : i32
    %c0_i32_0 = arith.constant 0 : i32
    %c0_i32_1 = arith.constant 0 : i32
    return %arg0, %c0_i32, %c0_i32_0 : i32, i32, i32
  }
  func.func @transform_2(%arg0: i32, %arg1: i32) -> (i32, i32, i32) {
    %c0_i32 = arith.constant 0 : i32
    %c0_i32_0 = arith.constant 0 : i32
    %c0_i32_1 = arith.constant 0 : i32
    return %arg0, %c0_i32, %c0_i32_0 : i32, i32, i32
  }
  func.func @transform_3(%arg0: i32, %arg1: i32) -> (i32, i32, i32) {
    %c0_i32 = arith.constant 0 : i32
    %c0_i32_0 = arith.constant 0 : i32
    return %arg0, %arg1, %c0_i32 : i32, i32, i32
  }
}

</mosaic_0001>

<llo_original>
// kernel: tpu_custom_call.1
$region0: #{tpu_custom_call.1}
  #allocation0 [shape = 'u32[]', space=smem, size = 0x4, offset = 0x4, fixed_abs, tag = 'smem constant byte address 0x4 - core index']
  #allocation1 [shape = 'u32[144,128]{1,0:T(1,128)}', space=vmem, size = 0x12000, scoped, tag = 'internal scratch']
  #allocation2 [shape = 'f32[2,16,32]{2,1,0:T(8,128)}', space=vmem, size = 0x4000, scoped, tag = 'scratch operand']
  %s0 = inlined_call_operand.hbm [shape: f32[4,8,32], index: 0, kind: input, shape index: {}]
  %s1 = inlined_call_operand.hbm [shape: f32[4,16,32], index: 1, kind: input, shape index: {}]
  %s2 = inlined_call_operand.vmem [shape: f32[4,1,16], index: 2, kind: input, shape index: {}]
  %s3 = inlined_call_operand.hbm [shape: f32[4,8,16], index: 3, kind: output, shape index: {}]
  %s4 = sld [smem:[#allocation0]]
  $region57: #{tpu_custom_call.1} parent=0
    _
  %s6 = ssub.s32 1, %s4
  %s7 = scalar_select 0, %s6, %s4
  $region1: #{tpu_custom_call.1} parent=0
    #allocation3 [shape = 'u8[16384]{0}', space=vmem, size = 0x4000, scoped, tag = 'input window, operand 0']
    #allocation4 [shape = 's32[2]{0}', space=sflag, size = 0x8, scoped, tag = 'scoped memory for tpu_custom_call.1']
    #allocation5 [shape = 's32[2]{0}', space=sflag, size = 0x8, scoped, tag = 'scoped memory for tpu_custom_call.1']
    #allocation6 [shape = 'u8[32768]{0}', space=vmem, size = 0x8000, scoped, tag = 'input window, operand 1']
    #allocation7 [shape = 's32[2]{0}', space=sflag, size = 0x8, scoped, tag = 'scoped memory for tpu_custom_call.1']
    #allocation8 [shape = 'u8[16384]{0}', space=vmem, size = 0x4000, scoped, tag = 'output window, operand 0']
    %8 = vsyncpa [#allocation4], 0
    %s9 = scalar_lea.sflag [#allocation4], 1
    %10 = vsyncpa %s9, 0
    %11 = vsyncpa [#allocation7], 0
    %s12 = scalar_lea.sflag [#allocation7], 1
    %13 = vsyncpa %s12, 0
    %14 = vsyncpa [#allocation5], 0
    %s15 = scalar_lea.sflag [#allocation5], 1
    %16 = vsyncpa %s15, 0
    loop: start=0, step=1, limit=4
    $region2: #{tpu_custom_call.1} parent=1 // loop_pre_header
      _
    $region3: #{tpu_custom_call.1} parent=1 // loop_header
      %s18 = sphi 0, %s22
      %p19 = scmp.ge.s32.totalorder %s18, 4
      %s25 = sphi 0, %s37
      %s26 = sphi 0, %s33
      %s27 = sphi 0, %s25
      %s28 = sphi 0, %s26
      %s29 = sphi 0, %s27
      %s30 = sphi 0, %s28
      %s42 = sphi 0, %s44
      %s45 = sphi 0, %s42
      %s46 = sphi 0, %s45
      %s62 = sphi 0, %s46
      %s68 = sphi 0, %s70
      %s71 = sphi 0, %s68
      %s72 = sphi 0, %s71
      %s88 = sphi 0, %s72
      %s94 = sphi 0, %s96
      %s97 = sphi 0, %s94
      %s98 = sphi 0, %s97
      %s114 = sphi 0, %s98
      %s122 = sphi 0, %s124
      %s125 = sphi 0, %s122
      %s126 = sphi 0, %s125
      %s142 = sphi 0, %s126
    $region4: #{tpu_custom_call.1} parent=1 // loop_header_branch
      %21 = sbr.rel (%p19) target = $region8
    $region5: #{tpu_custom_call.1} parent=1 // loop_body
      %s23 = ssub.s32 %s18, 1
      %s24 = ssub.s32 %s18, 2
      %s31 = sadd.s32 1, %s26
      %p32 = scmp.ge.s32.totalorder %s31, 1
      %s33 = scalar_select %p32, 0, %s31
      %s34 = sadd.s32 1, %s25
      %s35 = scalar_select %p32, %s34, %s25
      %p36 = scmp.ge.s32.totalorder %s35, 2
      %s37 = scalar_select %p36, 0, %s35
      %s38 = ssub.s32 %s25, %s37
      %s39 = ssub.s32 %s26, %s33
      %s40 = sor.u32 %s38, %s39
      %p41 = scmp.eq.s32.totalorder %s40, 0
      %s43 = sadd.s32 %s42, 1
      %s44 = scalar_select %p41, %s42, %s43
      %p47 = pneg %p41
      %p48 = scmp.eq.s32.totalorder %s18, 1
      %p49 = por %p47, %p48
      %p50 = scmp.ne.s32.totalorder %s42, %s45
      %p51 = scmp.eq.s32.totalorder %s18, 0
      %p52 = por %p50, %p51
      %p53 = scmp.ne.s32.totalorder %s42, %s45
      %p54 = scmp.eq.s32.totalorder %s23, 1
      %p55 = por %p53, %p54
      %p56 = scmp.ne.s32.totalorder %s45, %s46
      %p57 = scmp.eq.s32.totalorder %s23, 0
      %p58 = por %p56, %p57
      %p59 = scmp.ne.s32.totalorder %s45, %s46
      %p60 = scmp.eq.s32.totalorder %s24, 1
      %p61 = por %p59, %p60
      %p63 = scmp.ne.s32.totalorder %s46, %s62
      %p64 = scmp.eq.s32.totalorder %s24, 0
      %p65 = por %p63, %p64
      %s66 = ssub.s32 %s25, %s37
      %p67 = scmp.eq.s32.totalorder %s66, 0
      %s69 = sadd.s32 %s68, 1
      %s70 = scalar_select %p67, %s68, %s69
      %p73 = pneg %p67
      %p74 = scmp.eq.s32.totalorder %s18, 1
      %p75 = por %p73, %p74
      %p76 = scmp.ne.s32.totalorder %s68, %s71
      %p77 = scmp.eq.s32.totalorder %s18, 0
      %p78 = por %p76, %p77
      %p79 = scmp.ne.s32.totalorder %s68, %s71
      %p80 = scmp.eq.s32.totalorder %s23, 1
      %p81 = por %p79, %p80
      %p82 = scmp.ne.s32.totalorder %s71, %s72
      %p83 = scmp.eq.s32.totalorder %s23, 0
      %p84 = por %p82, %p83
      %p85 = scmp.ne.s32.totalorder %s71, %s72
      %p86 = scmp.eq.s32.totalorder %s24, 1
      %p87 = por %p85, %p86
      %p89 = scmp.ne.s32.totalorder %s72, %s88
      %p90 = scmp.eq.s32.totalorder %s24, 0
      %p91 = por %p89, %p90
      %s92 = ssub.s32 %s25, %s37
      %p93 = scmp.eq.s32.totalorder %s92, 0
      %s95 = sadd.s32 %s94, 1
      %s96 = scalar_select %p93, %s94, %s95
      %p99 = pneg %p93
      %p100 = scmp.eq.s32.totalorder %s18, 1
      %p101 = por %p99, %p100
      %p102 = scmp.ne.s32.totalorder %s94, %s97
      %p103 = scmp.eq.s32.totalorder %s18, 0
      %p104 = por %p102, %p103
      %p105 = scmp.ne.s32.totalorder %s94, %s97
      %p106 = scmp.eq.s32.totalorder %s23, 1
      %p107 = por %p105, %p106
      %p108 = scmp.ne.s32.totalorder %s97, %s98
      %p109 = scmp.eq.s32.totalorder %s23, 0
      %p110 = por %p108, %p109
      %p111 = scmp.ne.s32.totalorder %s97, %s98
      %p112 = scmp.eq.s32.totalorder %s24, 1
      %p113 = por %p111, %p112
      %p115 = scmp.ne.s32.totalorder %s98, %s114
      %p116 = scmp.eq.s32.totalorder %s24, 0
      %p117 = por %p115, %p116
      %s118 = ssub.s32 %s25, %s37
      %s119 = ssub.s32 %s26, %s33
      %s120 = sor.u32 %s118, %s119
      %p121 = scmp.eq.s32.totalorder %s120, 0
      %s123 = sadd.s32 %s122, 1
      %s124 = scalar_select %p121, %s122, %s123
      %p127 = pneg %p121
      %p128 = scmp.eq.s32.totalorder %s18, 1
      %p129 = por %p127, %p128
      %p130 = scmp.ne.s32.totalorder %s122, %s125
      %p131 = scmp.eq.s32.totalorder %s18, 0
      %p132 = por %p130, %p131
      %p133 = scmp.ne.s32.totalorder %s122, %s125
      %p134 = scmp.eq.s32.totalorder %s23, 1
      %p135 = por %p133, %p134
      %p136 = scmp.ne.s32.totalorder %s125, %s126
      %p137 = scmp.eq.s32.totalorder %s23, 0
      %p138 = por %p136, %p137
      %p139 = scmp.ne.s32.totalorder %s125, %s126
      %p140 = scmp.eq.s32.totalorder %s24, 1
      %p141 = por %p139, %p140
      %p143 = scmp.ne.s32.totalorder %s126, %s142
      %p144 = scmp.eq.s32.totalorder %s24, 0
      %p145 = por %p143, %p144
      %p146 = scmp.le.s32.totalorder 1, %s18
      %p147 = scmp.lt.s32.totalorder %s18, 3
      %p148 = pnand %p146, %p147
      %p149 = pneg %p148
      // Predicated region
      $region9: #{tpu_custom_call.1} parent=5 // pred_check
        _
      $region10: #{tpu_custom_call.1} parent=5 // pred_check_branch
        %151 = sbr.rel (%p148) target = $region12
      $region11: #{tpu_custom_call.1} parent=5 // pred_region
        %s152 = ssub.s32 %s18, 1
      $region12: #{tpu_custom_call.1} parent=5 // pred_fallthru
        _
      %p153 = scmp.lt.s32.totalorder %s18, 2
      // Predicated region
      $region13: #{tpu_custom_call.1} parent=5 // pred_check
        %p154 = pneg %p153
      $region14: #{tpu_custom_call.1} parent=5 // pred_check_branch
        %156 = sbr.rel (%p154) target = $region16
      $region15: #{tpu_custom_call.1} parent=5 // pred_region
        // Predicated region
        $region17: #{tpu_custom_call.1} parent=15 // pred_check
          %p157 = pneg %p52
        $region18: #{tpu_custom_call.1} parent=15 // pred_check_branch
          %159 = sbr.rel (%p157) target = $region20
        $region19: #{tpu_custom_call.1} parent=15 // pred_region
          %s160 = sand.u32 %s42, 1
          %s161 = scalar_lea.sflag [#allocation4], %s160
          %s162 = sand.u32 %s42, 1
          %s163 = smul.addr %s162, 16
          %s164 = scalar_lea.vmem [#allocation3], %s163
          %s165 = smul.u32 2, %s25
          %s167 = ssub.s32 256, 256
          %168 = vsyncadd %s161, %s167
          %s169 = sadd.s32 %s26, %s165
          %s170 = smul.addr %s169, 128
          %s171 = scalar_lea.hbm %s0, %s170
          %s172 = sshll.u32 %s164, 4
          %s173 = int_to_ptr.vmem [resolvable:$true] %s172
          %178 = dma.hbm_to_vmem [thread:$0]  %s171, 256, %s173, %s161, 128, 128, 8
        $region20: #{tpu_custom_call.1} parent=15 // pred_fallthru
          _
        // Predicated region
        $region21: #{tpu_custom_call.1} parent=15 // pred_check
          %p179 = pneg %p78
        $region22: #{tpu_custom_call.1} parent=15 // pred_check_branch
          %181 = sbr.rel (%p179) target = $region24
        $region23: #{tpu_custom_call.1} parent=15 // pred_region
          %s182 = sand.u32 %s68, 1
          %s183 = scalar_lea.sflag [#allocation7], %s182
          %s184 = sand.u32 %s68, 1
          %s185 = smul.addr %s184, 32
          %s186 = scalar_lea.vmem [#allocation6], %s185
          %s187 = smul.u32 2, %s25
          %s189 = ssub.s32 512, 512
          %190 = vsyncadd %s183, %s189
          %s191 = smul.addr %s187, 2
          %s192 = smul.addr %s191, 128
          %s193 = scalar_lea.hbm %s1, %s192
          %s194 = sshll.u32 %s186, 4
          %s195 = int_to_ptr.vmem [resolvable:$true] %s194
          %200 = dma.hbm_to_vmem [thread:$0]  %s193, 512, %s195, %s183, 128, 128, 8
        $region24: #{tpu_custom_call.1} parent=15 // pred_fallthru
          _
        // Predicated region
        $region25: #{tpu_custom_call.1} parent=15 // pred_check
          %p201 = pneg %p104
        $region26: #{tpu_custom_call.1} parent=15 // pred_check_branch
          %203 = sbr.rel (%p201) target = $region28
        $region27: #{tpu_custom_call.1} parent=15 // pred_region
          %s204 = smul.u32 2, %s25
          %p205 = scmp.lt.s32.totalorder %s204, 3
          %s206 = scalar_select %p205, %s204, 3
          %s207 = scalar_lea.vmem %s2, %s206
          %s208 = smul.u32 2, %s25
        $region28: #{tpu_custom_call.1} parent=15 // pred_fallthru
          _
      $region16: #{tpu_custom_call.1} parent=5 // pred_fallthru
        _
      %p209 = scmp.le.s32.totalorder 1, %s18
      %p210 = scmp.lt.s32.totalorder %s18, 3
      %p211 = pnand %p209, %p210
      %p212 = pneg %p211
      // Predicated region
      $region29: #{tpu_custom_call.1} parent=5 // pred_check
        _
      $region30: #{tpu_custom_call.1} parent=5 // pred_check_branch
        %214 = sbr.rel (%p211) target = $region32
      $region31: #{tpu_custom_call.1} parent=5 // pred_region
        %s215 = ssub.s32 %s18, 1
        %s216 = sand.u32 %s45, 1
        %s217 = scalar_lea.sflag [#allocation4], %s216
        %s218 = sand.u32 %s45, 1
        %s219 = smul.addr %s218, 16
        %s220 = scalar_lea.vmem [#allocation3], %s219
        // Predicated region
        $region33: #{tpu_custom_call.1} parent=31 // pred_check
          %p221 = pneg %p58
        $region34: #{tpu_custom_call.1} parent=31 // pred_check_branch
          %223 = sbr.rel (%p221) target = $region36
        $region35: #{tpu_custom_call.1} parent=31 // pred_region
          %224 = dma.done %s217, 256
        $region36: #{tpu_custom_call.1} parent=31 // pred_fallthru
          _
        %s225 = sand.u32 %s71, 1
        %s226 = scalar_lea.sflag [#allocation7], %s225
        %s227 = sand.u32 %s71, 1
        %s228 = smul.addr %s227, 32
        %s229 = scalar_lea.vmem [#allocation6], %s228
        // Predicated region
        $region37: #{tpu_custom_call.1} parent=31 // pred_check
          %p230 = pneg %p84
        $region38: #{tpu_custom_call.1} parent=31 // pred_check_branch
          %232 = sbr.rel (%p230) target = $region40
        $region39: #{tpu_custom_call.1} parent=31 // pred_region
          %233 = dma.done %s226, 512
        $region40: #{tpu_custom_call.1} parent=31 // pred_fallthru
          _
        %s234 = sand.u32 %s45, 1
        %s235 = scalar_lea.sflag [#allocation4], %s234
        %s236 = sand.u32 %s45, 1
        %s237 = smul.addr %s236, 16
        %s238 = scalar_lea.vmem [#allocation3], %s237
        %p239 = pneg %p58
        %p240 = pneg %p55
        %s241 = sand.u32 %s71, 1
        %s242 = scalar_lea.sflag [#allocation7], %s241
        %s243 = sand.u32 %s71, 1
        %s244 = smul.addr %s243, 32
        %s245 = scalar_lea.vmem [#allocation6], %s244
        %p246 = pneg %p84
        %p247 = pneg %p81
        %s248 = smul.u32 2, %s27
        %p249 = scmp.lt.s32.totalorder %s248, 3
        %s250 = scalar_select %p249, %s248, 3
        %s251 = scalar_lea.vmem %s2, %s250
        %p252 = pneg %p110
        %p253 = pneg %p107
        %p254 = pneg %p138
        %p255 = pneg %p135
        %s256 = sand.u32 %s125, 1
        %s257 = scalar_lea.sflag [#allocation5], %s256
        %s258 = sand.u32 %s125, 1
        %s259 = smul.addr %s258, 16
        %s260 = scalar_lea.vmem [#allocation8], %s259
        %s261 = smul.u32 2, %s27
        %s262 = smul.u32 2, %s27
        %s263 = smul.u32 2, %s27
        %p264 = scmp.lt.s32.totalorder %s263, 3
        %s265 = scalar_select %p264, %s263, 3
        %s266 = scalar_lea.vmem %s2, %s265
        %s267 = smul.u32 2, %s27
        %s268 = smul.u32 2, %s27
        %p269 = scmp.eq.s32.totalorder %s28, 0
        // Predicated region
        $region41: #{tpu_custom_call.1} parent=31 // pred_check
          %p270 = pneg %p269
        $region42: #{tpu_custom_call.1} parent=31 // pred_check_branch
          %272 = sbr.rel (%p270) target = $region44
        $region43: #{tpu_custom_call.1} parent=31 // pred_region
          %v273 = vld [vmem:[%s229] sm:$0xff]
          %v274 = vld [vmem:[%s229 + $0x8] sm:$0xff]
          %v275 = vld [vmem:[%s229 + $0x10] sm:$0xff]
          %v276 = vld [vmem:[%s229 + $0x18] sm:$0xff]
          %v277 = vmax.f32 %v273, 0.0
          %v278 = vmax.f32 %v274, 0.0
          %v279 = vmax.f32 %v275, 0.0
          %v280 = vmax.f32 %v276, 0.0
          %vm281 = vcmp.ne.f32.partialorder %v273, %v273
          %vm282 = vcmp.ne.f32.partialorder %v274, %v274
          %vm283 = vcmp.ne.f32.partialorder %v275, %v275
          %vm284 = vcmp.ne.f32.partialorder %v276, %v276
          %v285 = vadd.f32 %v273, 0.0
          %v286 = vadd.f32 %v274, 0.0
          %v287 = vadd.f32 %v275, 0.0
          %v288 = vadd.f32 %v276, 0.0
          %v289 = vand.u32 2147483647, %v273
          %v290 = vand.u32 2147483647, %v274
          %v291 = vand.u32 2147483647, %v275
          %v292 = vand.u32 2147483647, %v276
          %v293 = vsub.f32 0.0, %v289
          %v294 = vsub.f32 0.0, %v290
          %v295 = vsub.f32 0.0, %v291
          %v296 = vsub.f32 0.0, %v292
          %v297 = vmul.f32 %v293, 1.442695
          %v298 = vpow.pop %v297
          %v299 = vmul.f32 %v294, 1.442695
          %v300 = vpow.pop %v299
          %v301 = vmul.f32 %v295, 1.442695
          %v302 = vpow.pop %v301
          %v303 = vmul.f32 %v296, 1.442695
          %v304 = vpow.pop %v303
          %v305 = vadd.f32 %v298, 1.0
          %v306 = vlog2.pop %v305
          %v307 = vmul.f32 %v306, 0.6931472
          %v308 = vmul.f32 -0.5, %v298
          %v309 = vadd.f32 %v308, 1.0
          %v310 = vmul.f32 %v309, %v298
          %v311 = vand.u32 2147483647, %v298
          %vm312 = vcmp.lt.f32.partialorder %v311, 0.0004427343
          %v313 = vsel %vm312, %v310, %v307
          %v314 = vadd.f32 %v300, 1.0
          %v315 = vlog2.pop %v314
          %v316 = vmul.f32 %v315, 0.6931472
          %v317 = vmul.f32 -0.5, %v300
          %v318 = vadd.f32 %v317, 1.0
          %v319 = vmul.f32 %v318, %v300
          %v320 = vand.u32 2147483647, %v300
          %vm321 = vcmp.lt.f32.partialorder %v320, 0.0004427343
          %v322 = vsel %vm321, %v319, %v316
          %v323 = vadd.f32 %v302, 1.0
          %v324 = vlog2.pop %v323
          %v325 = vmul.f32 %v324, 0.6931472
          %v326 = vmul.f32 -0.5, %v302
          %v327 = vadd.f32 %v326, 1.0
          %v328 = vmul.f32 %v327, %v302
          %v329 = vand.u32 2147483647, %v302
          %vm330 = vcmp.lt.f32.partialorder %v329, 0.0004427343
          %v331 = vsel %vm330, %v328, %v325
          %v332 = vadd.f32 %v304, 1.0
          %v333 = vlog2.pop %v332
          %v334 = vmul.f32 %v333, 0.6931472
          %v335 = vmul.f32 -0.5, %v304
          %v336 = vadd.f32 %v335, 1.0
          %v337 = vmul.f32 %v336, %v304
          %v338 = vand.u32 2147483647, %v304
          %vm339 = vcmp.lt.f32.partialorder %v338, 0.0004427343
          %v340 = vsel %vm339, %v337, %v334
          %v341 = vadd.f32 %v277, %v313
          %v342 = vadd.f32 %v278, %v322
          %v343 = vadd.f32 %v279, %v331
          %v344 = vadd.f32 %v280, %v340
          %v345 = vsel %vm281, %v285, %v341
          %v346 = vsel %vm282, %v286, %v342
          %v347 = vsel %vm283, %v287, %v343
          %v348 = vsel %vm284, %v288, %v344
          %vm349 = vcmask 261120
          %350 = vst.msk [vmem:[#allocation2] sm:$0xff] %vm349, %v345
          %351 = vst.msk [vmem:[#allocation2 + $0x8] sm:$0xff] %vm349, %v346
          %352 = vst.msk [vmem:[#allocation2 + $0x10] sm:$0xff] %vm349, %v347
          %353 = vst.msk [vmem:[#allocation2 + $0x18] sm:$0xff] %vm349, %v348
        $region44: #{tpu_custom_call.1} parent=31 // pred_fallthru
          _
        %v354 = vld [vmem:[%s220] sm:$0xff]
        %v355 = vld [vmem:[%s220 + $0x8] sm:$0xff]
        %v356 = vld [vmem:[#allocation2] sm:$0xff]
        %v357 = vld [vmem:[#allocation2 + $0x8] sm:$0xff]
        %v358 = vld [vmem:[#allocation2 + $0x10] sm:$0xff]
        %v359 = vld [vmem:[#allocation2 + $0x18] sm:$0xff]
        %v360 = vld [vmem:[%s266] sm:$0x1]
        %v361 = vld [vmem:[%s266 + $0x1] sm:$0x1]
        %v364 = vlaneseq
        %v365 = vshrl.u32 %v364, 7
        %v366 = vsub.s32 0, %v365
        %v367 = vrot.slane %v360, %v366
        %v368 = vlaneseq
        %v369 = vshrl.u32 %v368, 7
        %v370 = vsub.s32 0, %v369
        %v371 = vrot.slane %v361, %v370
        %vm374 = vcmask 261120
        %v376 = vsel %vm374, %v354, 0
        %v379 = vsel %vm374, %v356, 0
        %v382 = vsel %vm374, %v357, 0
        %384 = vmatprep.subr.mxu0 0.0
        %385 = vmatpush1.xpose.msra.mxu0 %v379
        %386 = vmatprep.subr.mxu0 0.0
        %387 = vmatpush1.xpose.msra.mxu0 %v382
        %388 = vmatprep.subr.mxu0 0.0
        %389 = vmatpush1.xpose.msra.mxu0 0.0
        %390 = vmatprep.subr.mxu0 0.0
        %391 = vmatpush1.xpose.msra.mxu0 0.0
        %392 = vmatprep.subr.mxu0 0.0
        %393 = vmatpush1.xpose.msra.mxu0 0.0
        %394 = vmatprep.subr.mxu0 0.0
        %395 = vmatpush1.xpose.msra.mxu0 0.0
        %396 = vmatprep.subr.mxu0 0.0
        %397 = vmatpush1.xpose.msra.mxu0 0.0
        %398 = vmatprep.subr.mxu0 0.0
        %399 = vmatpush1.xpose.msra.mxu0 0.0
        %400 = vmatprep.subr.mxu0 0.0
        %401 = vmatpush1.xpose.msra.mxu0 0.0
        %402 = vmatprep.subr.mxu0 0.0
        %403 = vmatpush1.xpose.msra.mxu0 0.0
        %404 = vmatprep.subr.mxu0 0.0
        %405 = vmatpush1.xpose.msra.mxu0 0.0
        %406 = vmatprep.subr.mxu0 0.0
        %407 = vmatpush1.xpose.msra.mxu0 0.0
        %408 = vmatprep.subr.mxu0 0.0
        %409 = vmatpush1.xpose.msra.mxu0 0.0
        %410 = vmatprep.subr.mxu0 0.0
        %411 = vmatpush1.xpose.msra.mxu0 0.0
        %412 = vmatprep.subr.mxu0 0.0
        %413 = vmatpush1.xpose.msra.mxu0 0.0
        %414 = vmatprep.subr.mxu0 0.0
        %415 = vmatpush1.xpose.msra.mxu0 0.0
        %416 = vmatprep.subr.mxu0 0.0
        %417 = vmatpush1.xpose.msra.mxu0 0.0
        %418 = vmatprep.subr.mxu0 0.0
        %419 = vmatpush1.xpose.msra.mxu0 0.0
        %420 = vmatprep.subr.mxu0 0.0
        %421 = vmatpush1.xpose.msra.mxu0 0.0
        %422 = vmatprep.subr.mxu0 0.0
        %423 = vmatpush1.xpose.msra.mxu0 0.0
        %424 = vmatprep.subr.mxu0 0.0
        %425 = vmatpush1.xpose.msra.mxu0 0.0
        %426 = vmatprep.subr.mxu0 0.0
        %427 = vmatpush1.xpose.msra.mxu0 0.0
        %428 = vmatprep.subr.mxu0 0.0
        %429 = vmatpush1.xpose.msra.mxu0 0.0
        %430 = vmatprep.subr.mxu0 0.0
        %431 = vmatpush1.xpose.msra.mxu0 0.0
        %432 = vmatprep.subr.mxu0 0.0
        %433 = vmatpush1.xpose.msra.mxu0 0.0
        %434 = vmatprep.subr.mxu0 0.0
        %435 = vmatpush1.xpose.msra.mxu0 0.0
        %436 = vmatprep.subr.mxu0 0.0
        %437 = vmatpush1.xpose.msra.mxu0 0.0
        %438 = vmatprep.subr.mxu0 0.0
        %439 = vmatpush1.xpose.msra.mxu0 0.0
        %440 = vmatprep.subr.mxu0 0.0
        %441 = vmatpush1.xpose.msra.mxu0 0.0
        %442 = vmatprep.subr.mxu0 0.0
        %443 = vmatpush1.xpose.msra.mxu0 0.0
        %444 = vmatprep.subr.mxu0 0.0
        %445 = vmatpush1.xpose.msra.mxu0 0.0
        %446 = vmatprep.subr.mxu0 0.0
        %447 = vmatpush1.xpose.msra.mxu0 0.0
        %448 = vmatprep.mubr.f32.mxu0 0.0
        %449 = vmatmul.mubr.f32.gmra.mrb[0].mxu0 %v376
        %v450 = vpop.f32.mrb[0].mxu0
        %v451 = vadd.f32 %v367, %v450
        %v452 = vpop.f32.mrb[0].mxu0
        %453 = vdwg.mxu0
        %v455 = vsel %vm374, %v355, 0
        %v458 = vsel %vm374, %v358, 0
        %v461 = vsel %vm374, %v359, 0
        %463 = vmatprep.subr.mxu0 0.0
        %464 = vmatpush1.xpose.msra.mxu0 %v458
        %465 = vmatprep.subr.mxu0 0.0
        %466 = vmatpush1.xpose.msra.mxu0 %v461
        %467 = vmatprep.subr.mxu0 0.0
        %468 = vmatpush1.xpose.msra.mxu0 0.0
        %469 = vmatprep.subr.mxu0 0.0
        %470 = vmatpush1.xpose.msra.mxu0 0.0
        %471 = vmatprep.subr.mxu0 0.0
        %472 = vmatpush1.xpose.msra.mxu0 0.0
        %473 = vmatprep.subr.mxu0 0.0
        %474 = vmatpush1.xpose.msra.mxu0 0.0
        %475 = vmatprep.subr.mxu0 0.0
        %476 = vmatpush1.xpose.msra.mxu0 0.0
        %477 = vmatprep.subr.mxu0 0.0
        %478 = vmatpush1.xpose.msra.mxu0 0.0
        %479 = vmatprep.subr.mxu0 0.0
        %480 = vmatpush1.xpose.msra.mxu0 0.0
        %481 = vmatprep.subr.mxu0 0.0
        %482 = vmatpush1.xpose.msra.mxu0 0.0
        %483 = vmatprep.subr.mxu0 0.0
        %484 = vmatpush1.xpose.msra.mxu0 0.0
        %485 = vmatprep.subr.mxu0 0.0
        %486 = vmatpush1.xpose.msra.mxu0 0.0
        %487 = vmatprep.subr.mxu0 0.0
        %488 = vmatpush1.xpose.msra.mxu0 0.0
        %489 = vmatprep.subr.mxu0 0.0
        %490 = vmatpush1.xpose.msra.mxu0 0.0
        %491 = vmatprep.subr.mxu0 0.0
        %492 = vmatpush1.xpose.msra.mxu0 0.0
        %493 = vmatprep.subr.mxu0 0.0
        %494 = vmatpush1.xpose.msra.mxu0 0.0
        %495 = vmatprep.subr.mxu0 0.0
        %496 = vmatpush1.xpose.msra.mxu0 0.0
        %497 = vmatprep.subr.mxu0 0.0
        %498 = vmatpush1.xpose.msra.mxu0 0.0
        %499 = vmatprep.subr.mxu0 0.0
        %500 = vmatpush1.xpose.msra.mxu0 0.0
        %501 = vmatprep.subr.mxu0 0.0
        %502 = vmatpush1.xpose.msra.mxu0 0.0
        %503 = vmatprep.subr.mxu0 0.0
        %504 = vmatpush1.xpose.msra.mxu0 0.0
        %505 = vmatprep.subr.mxu0 0.0
        %506 = vmatpush1.xpose.msra.mxu0 0.0
        %507 = vmatprep.subr.mxu0 0.0
        %508 = vmatpush1.xpose.msra.mxu0 0.0
        %509 = vmatprep.subr.mxu0 0.0
        %510 = vmatpush1.xpose.msra.mxu0 0.0
        %511 = vmatprep.subr.mxu0 0.0
        %512 = vmatpush1.xpose.msra.mxu0 0.0
        %513 = vmatprep.subr.mxu0 0.0
        %514 = vmatpush1.xpose.msra.mxu0 0.0
        %515 = vmatprep.subr.mxu0 0.0
        %516 = vmatpush1.xpose.msra.mxu0 0.0
        %517 = vmatprep.subr.mxu0 0.0
        %518 = vmatpush1.xpose.msra.mxu0 0.0
        %519 = vmatprep.subr.mxu0 0.0
        %520 = vmatpush1.xpose.msra.mxu0 0.0
        %521 = vmatprep.subr.mxu0 0.0
        %522 = vmatpush1.xpose.msra.mxu0 0.0
        %523 = vmatprep.subr.mxu0 0.0
        %524 = vmatpush1.xpose.msra.mxu0 0.0
        %525 = vmatprep.subr.mxu0 0.0
        %526 = vmatpush1.xpose.msra.mxu0 0.0
        %527 = vmatprep.mubr.f32.mxu0 0.0
        %528 = vmatmul.mubr.f32.gmra.mrb[0].mxu0 %v455
        %v529 = vpop.f32.mrb[0].mxu0
        %v530 = vadd.f32 %v371, %v529
        %v531 = vpop.f32.mrb[0].mxu0
        %532 = vdwg.mxu0
        %vm533 = vcmask 130048
        %534 = vst.msk [vmem:[%s260] sm:$0xff] %vm533, %v451
        %535 = vst.msk [vmem:[%s260 + $0x8] sm:$0xff] %vm533, %v530
        %s536 = sand.u32 %s125, 1
        %s537 = scalar_lea.sflag [#allocation5], %s536
        %s538 = sand.u32 %s125, 1
        %s539 = smul.addr %s538, 16
        %s540 = scalar_lea.vmem [#allocation8], %s539
        // Predicated region
        $region45: #{tpu_custom_call.1} parent=31 // pred_check
          %p541 = pneg %p135
        $region46: #{tpu_custom_call.1} parent=31 // pred_check_branch
          %543 = sbr.rel (%p541) target = $region48
        $region47: #{tpu_custom_call.1} parent=31 // pred_region
          %s544 = smul.u32 2, %s27
          %s546 = ssub.s32 256, 256
          %547 = vsyncadd %s537, %s546
          %s548 = sadd.s32 %s28, %s544
          %s549 = smul.addr %s548, 128
          %s550 = scalar_lea.hbm %s3, %s549
          %s551 = sshll.u32 %s540, 4
          %s552 = int_to_ptr.vmem [resolvable:$true] %s551
          %557 = dma.vmem_to_hbm [thread:$0]  %s552, 256, %s550, %s537, 128, 128, 8
        $region48: #{tpu_custom_call.1} parent=31 // pred_fallthru
          _
      $region32: #{tpu_custom_call.1} parent=5 // pred_fallthru
        _
      %p558 = scmp.le.s32.totalorder 2, %s18
      // Predicated region
      $region49: #{tpu_custom_call.1} parent=5 // pred_check
        %p559 = pneg %p558
      $region50: #{tpu_custom_call.1} parent=5 // pred_check_branch
        %561 = sbr.rel (%p559) target = $region52
      $region51: #{tpu_custom_call.1} parent=5 // pred_region
        %s562 = ssub.s32 %s18, 2
        // Predicated region
        $region53: #{tpu_custom_call.1} parent=51 // pred_check
          %p563 = pneg %p141
        $region54: #{tpu_custom_call.1} parent=51 // pred_check_branch
          %565 = sbr.rel (%p563) target = $region56
        $region55: #{tpu_custom_call.1} parent=51 // pred_region
          %s566 = sand.u32 %s126, 1
          %s567 = scalar_lea.sflag [#allocation5], %s566
          %s568 = sand.u32 %s126, 1
          %s569 = smul.addr %s568, 16
          %s570 = scalar_lea.vmem [#allocation8], %s569
          %571 = dma.done %s567, 256
        $region56: #{tpu_custom_call.1} parent=51 // pred_fallthru
          _
      $region52: #{tpu_custom_call.1} parent=5 // pred_fallthru
        _
    $region6: #{tpu_custom_call.1} parent=1 // loop_footer
      %s22 = sadd.s32 1, %s18
    $region7: #{tpu_custom_call.1} parent=1 // loop_footer_branch
      %17 = sbr.rel target = $region3
    $region8: #{tpu_custom_call.1} parent=1 // loop_exit
      _
    %572 = vsyncpa [#allocation4], 1
    %s573 = scalar_lea.sflag [#allocation4], 1
    %574 = vsyncpa %s573, 1
    %575 = vsyncpa [#allocation7], 1
    %s576 = scalar_lea.sflag [#allocation7], 1
    %577 = vsyncpa %s576, 1
    %578 = vsyncpa [#allocation5], 1
    %s579 = scalar_lea.sflag [#allocation5], 1
    %580 = vsyncpa %s579, 1

</llo_original>
